<compile_context>
chip_gen: v6e
topology: v6e:2x2x1
jax: 0.10.0
libtpu: 0.0.40
codegen_flags: <defaults>
</compile_context>

<pallas_src>
import math
import jax
import jax.numpy as jnp
from jax.experimental import pallas as pl
from jax.experimental.pallas import tpu as pltpu


def _round_up(x, m):
    return ((x + m - 1) // m) * m


def _adaptive_kernel(alpha_ref, x_ref, w1_ref, b1_ref, w2_ref, b2_ref, o_ref):
    # Scalar work hoisted: read alpha once, fold (1 - alpha).
    a = alpha_ref[0]
    one_minus_a = jnp.float32(1.0) - a

    x = x_ref[...]                                            # (TM, Dp)

    # Linear 1 + exact (erf-based) GELU, matching torch.nn.functional.gelu.
    h = jnp.dot(x, w1_ref[...], preferred_element_type=jnp.float32)
    h = h + b1_ref[...]                                       # (1, Hp) broadcast
    inv_sqrt2 = jnp.float32(1.0 / math.sqrt(2.0))
    h = 0.5 * h * (1.0 + jax.lax.erf(h * inv_sqrt2))

    # Linear 2
    x2 = jnp.dot(h, w2_ref[...], preferred_element_type=jnp.float32)
    x2 = x2 + b2_ref[...]                                     # (1, Dp) broadcast

    # Adaptive blend.
    o_ref[...] = (x * a + x2 * one_minus_a).astype(o_ref.dtype)


def optimated_adaptive_layer(x, w1, b1, w2, b2, alpha, *, tm=256):
    """x: (B, S, D).  w1: (D, 2D), b1: (1, 2D), w2: (2D, D), b2: (1, D),
    alpha: (1,) scalar array.  Weights are stored as (in, out) = PyTorch W^T."""
    B, S, D = x.shape
    H = 2 * D
    N = B * S

    # Lane-align feature dims (multiples of 128 -> unmasked vector stores).
    Dp = _round_up(D, 128)
    Hp = _round_up(H, 128)
    # Row tile: multiple of 8 sublanes, never larger than the (padded) problem.
    tm_eff = min(tm, _round_up(N, 8))
    Np = _round_up(N, tm_eff)

    xf = x.reshape(N, D)
    if (Np, Dp) != (N, D):
        xf = jnp.pad(xf, ((0, Np - N), (0, Dp - D)))
    if (Dp, Hp) != (D, H):
        w1 = jnp.pad(w1, ((0, Dp - D), (0, Hp - H)))
        b1 = jnp.pad(b1, ((0, 0), (0, Hp - H)))
        w2 = jnp.pad(w2, ((0, Hp - H), (0, Dp - D)))
        b2 = jnp.pad(b2, ((0, 0), (0, Dp - D)))

    # VMEM budget: resident weights/biases (single copy) + double-buffered
    # x / out tiles + the (tm, Hp) intermediate, with slack.  Never go below
    # the default scoped limit; cap below physical VMEM.
    weights_bytes = (Dp * Hp + Hp * Dp + Hp + Dp) * 4
    tiles_bytes = tm_eff * Dp * 4 * 2 * 2 + tm_eff * Hp * 4 * 2
    vmem_limit = int((weights_bytes + tiles_bytes) * 1.5)
    vmem_limit = min(max(vmem_limit, 32 << 20), 96 << 20)

    # Advisory cost for the XLA scheduler around this custom call.
    cost = pl.CostEstimate(
        flops=4 * Np * Dp * Hp,                      # two (Np,Dp)x(Dp/Hp) matmuls
        transcendentals=Np * Hp,                     # erf per hidden element
        bytes_accessed=(2 * Np * Dp + 2 * Dp * Hp + Hp + Dp) * 4,
    )

    out = pl.pallas_call(
        _adaptive_kernel,
        out_shape=jax.ShapeDtypeStruct((Np, Dp), x.dtype),
        grid_spec=pltpu.PrefetchScalarGridSpec(
            num_scalar_prefetch=0,
            grid=(Np // tm_eff,),
            in_specs=[
                pl.BlockSpec(memory_space=pltpu.SMEM),           # alpha scalar
                pl.BlockSpec((tm_eff, Dp), lambda i: (i, 0)),    # x rows (pipelined)
                pl.BlockSpec(memory_space=pltpu.VMEM),           # W1 resident, 1 copy
                pl.BlockSpec(memory_space=pltpu.VMEM),           # b1 resident
                pl.BlockSpec(memory_space=pltpu.VMEM),           # W2 resident, 1 copy
                pl.BlockSpec(memory_space=pltpu.VMEM),           # b2 resident
            ],
            out_specs=pl.BlockSpec((tm_eff, Dp), lambda i: (i, 0)),
        ),
        compiler_params=pltpu.CompilerParams(
            dimension_semantics=("parallel",),
            vmem_limit_bytes=vmem_limit,
        ),
        cost_estimate=cost,
    )(alpha, xf, w1, b1, w2, b2)

    out = out[:N, :D]
    return out.reshape(B, S, D)


def _reference(x, w1, b1, w2, b2, alpha):
    h = x @ w1 + b1
    h = 0.5 * h * (1.0 + jax.lax.erf(h / jnp.sqrt(2.0)))
    x2 = h @ w2 + b2
    a = alpha[0]
    return x * a + x2 * (1.0 - a)


if __name__ == "__main__":
    key = jax.random.PRNGKey(0)
    B, S, D = 2, 8, 32
    H = 2 * D

    k_x, k_w1, k_b1, k_w2, k_b2 = jax.random.split(key, 5)

    # Deterministic parameter init mimicking nn.Linear defaults
    # (uniform(-1/sqrt(fan_in), 1/sqrt(fan_in))); stored as (in, out) = W^T.
    bound1 = 1.0 / math.sqrt(D)
    w1 = jax.random.uniform(k_w1, (D, H), jnp.float32, -bound1, bound1)
    b1 = jax.random.uniform(k_b1, (1, H), jnp.float32, -bound1, bound1)
    bound2 = 1.0 / math.sqrt(H)
    w2 = jax.random.uniform(k_w2, (H, D), jnp.float32, -bound2, bound2)
    b2 = jax.random.uniform(k_b2, (1, D), jnp.float32, -bound2, bound2)
    alpha = jnp.array([0.5], dtype=jnp.float32)      # optimation_weight

    x = jax.random.normal(k_x, (B, S, D), jnp.float32)

    out = optimated_adaptive_layer(x, w1, b1, w2, b2, alpha)
    out = jax.block_until_ready(out)

    ref = _reference(x, w1, b1, w2, b2, alpha)
    assert out.shape == (B, S, D)
    assert jnp.allclose(out, ref, atol=1e-5, rtol=1e-5)
    print("KERNEL_OK")
</pallas_src>

<mosaic_0001>
module attributes {stable_mosaic.version = 11 : i64} {
  func.func @_adaptive_kernel(%arg0: i32, %arg1: memref<1xf32, #tpu.memory_space<smem>>, %arg2: memref<16x128xf32, #tpu.memory_space<vmem>>, %arg3: memref<128x128xf32, #tpu.memory_space<vmem>>, %arg4: memref<1x128xf32, #tpu.memory_space<vmem>>, %arg5: memref<128x128xf32, #tpu.memory_space<vmem>>, %arg6: memref<1x128xf32, #tpu.memory_space<vmem>>, %arg7: memref<16x128xf32, #tpu.memory_space<vmem>>) attributes {dimension_semantics = [#tpu.dimension_semantics<parallel>], iteration_bounds = array<i64: 1>, scalar_prefetch = 0 : i64, scratch_operands = 0 : i64, tpu.core_type = #tpu.core_type<tc>, window_params = [{transform_indices = @transform_0, window_bounds = array<i64: 1>}, {transform_indices = @transform_1, window_bounds = array<i64: 16, 128>}, {pipeline_mode = #tpu.pipeline_mode<synchronous>, transform_indices = @transform_2, window_bounds = array<i64: 128, 128>}, {pipeline_mode = #tpu.pipeline_mode<synchronous>, transform_indices = @transform_3, window_bounds = array<i64: 1, 128>}, {pipeline_mode = #tpu.pipeline_mode<synchronous>, transform_indices = @transform_4, window_bounds = array<i64: 128, 128>}, {pipeline_mode = #tpu.pipeline_mode<synchronous>, transform_indices = @transform_5, window_bounds = array<i64: 1, 128>}, {transform_indices = @transform_6, window_bounds = array<i64: 16, 128>}]} {
    %c0 = arith.constant 0 : index
    %0 = memref.load %arg1[%c0] : memref<1xf32, #tpu.memory_space<smem>>
    %cst = arith.constant 1.000000e+00 : f32
    %1 = arith.subf %cst, %0 : f32
    %c0_0 = arith.constant 0 : index
    %c0_1 = arith.constant 0 : index
    %2 = vector.load %arg2[%c0_0, %c0_1] : memref<16x128xf32, #tpu.memory_space<vmem>>, vector<16x128xf32>
    %c0_2 = arith.constant 0 : index
    %c0_3 = arith.constant 0 : index
    %3 = vector.load %arg3[%c0_2, %c0_3] : memref<128x128xf32, #tpu.memory_space<vmem>>, vector<128x128xf32>
    %cst_4 = arith.constant dense<0.000000e+00> : vector<16x128xf32>
    %4 = tpu.matmul %2, %3, %cst_4 {dimension_numbers = #tpu.dot_dimension_numbers<[1], [0], [0], [1], [0, 0, 1, 1], [], []>} : vector<16x128xf32>, vector<128x128xf32>, vector<16x128xf32> -> vector<16x128xf32>
    %c0_5 = arith.constant 0 : index
    %c0_6 = arith.constant 0 : index
    %5 = vector.load %arg4[%c0_5, %c0_6] : memref<1x128xf32, #tpu.memory_space<vmem>>, vector<1x128xf32>
    %6 = vector.broadcast %5 : vector<1x128xf32> to vector<16x128xf32>
    %7 = arith.addf %4, %6 : vector<16x128xf32>
    %cst_7 = arith.constant 5.000000e-01 : f32
    %8 = vector.broadcast %cst_7 : f32 to vector<16x128xf32>
    %9 = arith.mulf %8, %7 : vector<16x128xf32>
    %cst_8 = arith.constant 0.707106769 : f32
    %10 = vector.broadcast %cst_8 : f32 to vector<16x128xf32>
    %11 = arith.mulf %7, %10 : vector<16x128xf32>
    %12 = math.erf %11 : vector<16x128xf32>
    %cst_9 = arith.constant 1.000000e+00 : f32
    %13 = vector.broadcast %cst_9 : f32 to vector<16x128xf32>
    %14 = arith.addf %13, %12 : vector<16x128xf32>
    %15 = arith.mulf %9, %14 : vector<16x128xf32>
    %c0_10 = arith.constant 0 : index
    %c0_11 = arith.constant 0 : index
    %16 = vector.load %arg5[%c0_10, %c0_11] : memref<128x128xf32, #tpu.memory_space<vmem>>, vector<128x128xf32>
    %cst_12 = arith.constant dense<0.000000e+00> : vector<16x128xf32>
    %17 = tpu.matmul %15, %16, %cst_12 {dimension_numbers = #tpu.dot_dimension_numbers<[1], [0], [0], [1], [0, 0, 1, 1], [], []>} : vector<16x128xf32>, vector<128x128xf32>, vector<16x128xf32> -> vector<16x128xf32>
    %c0_13 = arith.constant 0 : index
    %c0_14 = arith.constant 0 : index
    %18 = vector.load %arg6[%c0_13, %c0_14] : memref<1x128xf32, #tpu.memory_space<vmem>>, vector<1x128xf32>
    %19 = vector.broadcast %18 : vector<1x128xf32> to vector<16x128xf32>
    %20 = arith.addf %17, %19 : vector<16x128xf32>
    %21 = vector.broadcast %0 : f32 to vector<16x128xf32>
    %22 = arith.mulf %2, %21 : vector<16x128xf32>
    %23 = vector.broadcast %1 : f32 to vector<16x128xf32>
    %24 = arith.mulf %20, %23 : vector<16x128xf32>
    %25 = arith.addf %22, %24 : vector<16x128xf32>
    %c0_15 = arith.constant 0 : index
    %c0_16 = arith.constant 0 : index
    %26 = vector.load %arg7[%c0_15, %c0_16] : memref<16x128xf32, #tpu.memory_space<vmem>>, vector<16x128xf32>
    tpu.vector_store %arg7[%c0_15, %c0_16], %25 {strides = array<i32>} : memref<16x128xf32, #tpu.memory_space<vmem>>, vector<16x128xf32>,
    return
  }
  func.func @transform_0(%arg0: i32) -> i32 {
    %c0_i32 = arith.constant 0 : i32
    %c0_i32_0 = arith.constant 0 : i32
    return %c0_i32 : i32
  }
  func.func @transform_1(%arg0: i32) -> (i32, i32) {
    %c0_i32 = arith.constant 0 : i32
    %c0_i32_0 = arith.constant 0 : i32
    return %arg0, %c0_i32 : i32, i32
  }
  func.func @transform_2(%arg0: i32) -> (i32, i32) {
    %c0_i32 = arith.constant 0 : i32
    %c0_i32_0 = arith.constant 0 : i32
    %c0_i32_1 = arith.constant 0 : i32
    return %c0_i32, %c0_i32_0 : i32, i32
  }
  func.func @transform_3(%arg0: i32) -> (i32, i32) {
    %c0_i32 = arith.constant 0 : i32
    %c0_i32_0 = arith.constant 0 : i32
    %c0_i32_1 = arith.constant 0 : i32
    return %c0_i32, %c0_i32_0 : i32, i32
  }
  func.func @transform_4(%arg0: i32) -> (i32, i32) {
    %c0_i32 = arith.constant 0 : i32
    %c0_i32_0 = arith.constant 0 : i32
    %c0_i32_1 = arith.constant 0 : i32
    return %c0_i32, %c0_i32_0 : i32, i32
  }
  func.func @transform_5(%arg0: i32) -> (i32, i32) {
    %c0_i32 = arith.constant 0 : i32
    %c0_i32_0 = arith.constant 0 : i32
    %c0_i32_1 = arith.constant 0 : i32
    return %c0_i32, %c0_i32_0 : i32, i32
  }
  func.func @transform_6(%arg0: i32) -> (i32, i32) {
    %c0_i32 = arith.constant 0 : i32
    %c0_i32_0 = arith.constant 0 : i32
    return %arg0, %c0_i32 : i32, i32
  }
}

</mosaic_0001>

<llo_original>
// kernel: tpu_custom_call.1
$region0: #{tpu_custom_call.1}
  #allocation0 [shape = 'u32[]', space=smem, size = 0x4, offset = 0x4, fixed_abs, tag = 'smem constant byte address 0x4 - core index']
  #allocation1 [shape = 'u32[144,128]{1,0:T(1,128)}', space=vmem, size = 0x12000, scoped, tag = 'internal scratch']
  #allocation2 [shape = 'f32[1]{0:T(128)S(6)}', space=smem, size = 0x200, scoped, tag = 'scoped memory for tpu_custom_call.1']
  %s0 = inlined_call_operand.<no memory space> [shape: f32[1], index: 0, kind: input, shape index: {}]
  %s1 = inlined_call_operand.hbm [shape: f32[16,128], index: 1, kind: input, shape index: {}]
  %s2 = inlined_call_operand.hbm [shape: f32[128,128], index: 2, kind: input, shape index: {}]
  %s3 = inlined_call_operand.vmem [shape: f32[1,128], index: 3, kind: input, shape index: {}]
  %s4 = inlined_call_operand.hbm [shape: f32[128,128], index: 4, kind: input, shape index: {}]
  %s5 = inlined_call_operand.vmem [shape: f32[1,128], index: 5, kind: input, shape index: {}]
  %s6 = inlined_call_operand.hbm [shape: f32[16,128], index: 6, kind: output, shape index: {}]
  %s7 = sld [smem:[#allocation0]]
  $region46: #{tpu_custom_call.1} parent=0
    _
  %s9 = ssub.s32 1, %s7
  %s10 = scalar_select 0, %s9, %s7
  %11 = sst [smem:[#allocation2]] %s0
  $region1: #{tpu_custom_call.1} parent=0
    #allocation3 [shape = 'u8[8192]{0}', space=vmem, size = 0x2000, scoped, tag = 'input window, operand 1, single buffered']
    #allocation4 [shape = 's32[1]{0}', space=sflag, size = 0x4, scoped, tag = 'scoped memory for tpu_custom_call.1']
    #allocation5 [shape = 's32[1]{0}', space=sflag, size = 0x4, scoped, tag = 'scoped memory for tpu_custom_call.1']
    #allocation6 [shape = 'u8[65536]{0}', space=vmem, size = 0x10000, scoped, tag = 'input window, operand 2, single buffered']
    #allocation7 [shape = 's32[1]{0}', space=sflag, size = 0x4, scoped, tag = 'scoped memory for tpu_custom_call.1']
    #allocation8 [shape = 'u8[65536]{0}', space=vmem, size = 0x10000, scoped, tag = 'input window, operand 4, single buffered']
    #allocation9 [shape = 'u8[8192]{0}', space=vmem, size = 0x2000, scoped, tag = 'output window, operand 0, single buffered']
    %12 = vsyncpa [#allocation4], 0
    %13 = vsyncpa [#allocation7], 0
    %14 = vsyncpa [#allocation5], 0
    // Predicated region
    $region2: #{tpu_custom_call.1} parent=1 // pred_check
      _
    $region3: #{tpu_custom_call.1} parent=1 // pred_check_branch
      %16 = sbr.rel (0) target = $region5
    $region4: #{tpu_custom_call.1} parent=1 // pred_region
      _
    $region5: #{tpu_custom_call.1} parent=1 // pred_fallthru
      _
    // Predicated region
    $region6: #{tpu_custom_call.1} parent=1 // pred_check
      _
    $region7: #{tpu_custom_call.1} parent=1 // pred_check_branch
      %18 = sbr.rel (0) target = $region9
    $region8: #{tpu_custom_call.1} parent=1 // pred_region
      %s20 = ssub.s32 256, 256
      %21 = vsyncadd [#allocation4], %s20
      %s22 = sshll.u32 [#allocation3], 4
      %s23 = int_to_ptr.vmem [resolvable:$true] %s22
      %28 = dma.hbm_to_vmem [thread:$0]  %s1, 256, %s23, [#allocation4], 128, 128, 8
    $region9: #{tpu_custom_call.1} parent=1 // pred_fallthru
      _
    // Predicated region
    $region10: #{tpu_custom_call.1} parent=1 // pred_check
      _
    $region11: #{tpu_custom_call.1} parent=1 // pred_check_branch
      %30 = sbr.rel (0) target = $region13
    $region12: #{tpu_custom_call.1} parent=1 // pred_region
      %s32 = ssub.s32 2048, 2048
      %33 = vsyncadd [#allocation7], %s32
      %s34 = sshll.u32 [#allocation6], 4
      %s35 = int_to_ptr.vmem [resolvable:$true] %s34
      %40 = dma.hbm_to_vmem [thread:$0]  %s2, 2048, %s35, [#allocation7], 128, 128, 8
    $region13: #{tpu_custom_call.1} parent=1 // pred_fallthru
      _
    // Predicated region
    $region14: #{tpu_custom_call.1} parent=1 // pred_check
      _
    $region15: #{tpu_custom_call.1} parent=1 // pred_check_branch
      %42 = sbr.rel (0) target = $region17
    $region16: #{tpu_custom_call.1} parent=1 // pred_region
      _
    $region17: #{tpu_custom_call.1} parent=1 // pred_fallthru
      _
    // Predicated region
    $region18: #{tpu_custom_call.1} parent=1 // pred_check
      _
    $region19: #{tpu_custom_call.1} parent=1 // pred_check_branch
      %44 = sbr.rel (0) target = $region21
    $region20: #{tpu_custom_call.1} parent=1 // pred_region
      %s46 = ssub.s32 2048, 2048
      %47 = vsyncadd [#allocation7], %s46
      %s48 = sshll.u32 [#allocation8], 4
      %s49 = int_to_ptr.vmem [resolvable:$true] %s48
      %54 = dma.hbm_to_vmem [thread:$0]  %s4, 2048, %s49, [#allocation7], 128, 128, 8
    $region21: #{tpu_custom_call.1} parent=1 // pred_fallthru
      _
    // Predicated region
    $region22: #{tpu_custom_call.1} parent=1 // pred_check
      _
    $region23: #{tpu_custom_call.1} parent=1 // pred_check_branch
      %56 = sbr.rel (0) target = $region25
    $region24: #{tpu_custom_call.1} parent=1 // pred_region
      _
    $region25: #{tpu_custom_call.1} parent=1 // pred_fallthru
      _
    // Predicated region
    $region26: #{tpu_custom_call.1} parent=1 // pred_check
      _
    $region27: #{tpu_custom_call.1} parent=1 // pred_check_branch
      %58 = sbr.rel (0) target = $region29
    $region28: #{tpu_custom_call.1} parent=1 // pred_region
      %59 = dma.done [#allocation4], 256
    $region29: #{tpu_custom_call.1} parent=1 // pred_fallthru
      _
    // Predicated region
    $region30: #{tpu_custom_call.1} parent=1 // pred_check
      _
    $region31: #{tpu_custom_call.1} parent=1 // pred_check_branch
      %61 = sbr.rel (0) target = $region33
    $region32: #{tpu_custom_call.1} parent=1 // pred_region
      %62 = dma.done [#allocation7], 2048
    $region33: #{tpu_custom_call.1} parent=1 // pred_fallthru
      _
    // Predicated region
    $region34: #{tpu_custom_call.1} parent=1 // pred_check
      _
    $region35: #{tpu_custom_call.1} parent=1 // pred_check_branch
      %64 = sbr.rel (0) target = $region37
    $region36: #{tpu_custom_call.1} parent=1 // pred_region
      %65 = dma.done [#allocation7], 2048
    $region37: #{tpu_custom_call.1} parent=1 // pred_fallthru
      _
    %s66 = sld [smem:[#allocation2]]
    %s67 = ssub.f32 1.0, %s66
    %v68 = vld [vmem:[#allocation3] sm:$0xff]
    %v69 = vld [vmem:[#allocation3 + $0x8] sm:$0xff]
    %v70 = vld [vmem:[#allocation6] sm:$0xff]
    %v71 = vld [vmem:[#allocation6 + $0x8] sm:$0xff]
    %v72 = vld [vmem:[#allocation6 + $0x10] sm:$0xff]
    %v73 = vld [vmem:[#allocation6 + $0x18] sm:$0xff]
    %v74 = vld [vmem:[#allocation6 + $0x20] sm:$0xff]
    %v75 = vld [vmem:[#allocation6 + $0x28] sm:$0xff]
    %v76 = vld [vmem:[#allocation6 + $0x30] sm:$0xff]
    %v77 = vld [vmem:[#allocation6 + $0x38] sm:$0xff]
    %v78 = vld [vmem:[#allocation6 + $0x40] sm:$0xff]
    %v79 = vld [vmem:[#allocation6 + $0x48] sm:$0xff]
    %v80 = vld [vmem:[#allocation6 + $0x50] sm:$0xff]
    %v81 = vld [vmem:[#allocation6 + $0x58] sm:$0xff]
    %v82 = vld [vmem:[#allocation6 + $0x60] sm:$0xff]
    %v83 = vld [vmem:[#allocation6 + $0x68] sm:$0xff]
    %v84 = vld [vmem:[#allocation6 + $0x70] sm:$0xff]
    %v85 = vld [vmem:[#allocation6 + $0x78] sm:$0xff]
    %v86 = vld [vmem:[%s3] sm:$0x1]
    %v88 = vlaneseq
    %v89 = vshrl.u32 %v88, 7
    %v90 = vsub.s32 0, %v89
    %v91 = vrot.slane %v86, %v90
    %93 = vmatprep.subr.mxu0 0.0
    %94 = vmatpush1.msra.mxu0 %v85
    %95 = vmatprep.subr.mxu0 0.0
    %96 = vmatpush1.msra.mxu0 %v84
    %97 = vmatprep.subr.mxu0 0.0
    %98 = vmatpush1.msra.mxu0 %v83
    %99 = vmatprep.subr.mxu0 0.0
    %100 = vmatpush1.msra.mxu0 %v82
    %101 = vmatprep.subr.mxu0 0.0
    %102 = vmatpush1.msra.mxu0 %v81
    %103 = vmatprep.subr.mxu0 0.0
    %104 = vmatpush1.msra.mxu0 %v80
    %105 = vmatprep.subr.mxu0 0.0
    %106 = vmatpush1.msra.mxu0 %v79
    %107 = vmatprep.subr.mxu0 0.0
    %108 = vmatpush1.msra.mxu0 %v78
    %109 = vmatprep.subr.mxu0 0.0
    %110 = vmatpush1.msra.mxu0 %v77
    %111 = vmatprep.subr.mxu0 0.0
    %112 = vmatpush1.msra.mxu0 %v76
    %113 = vmatprep.subr.mxu0 0.0
    %114 = vmatpush1.msra.mxu0 %v75
    %115 = vmatprep.subr.mxu0 0.0
    %116 = vmatpush1.msra.mxu0 %v74
    %117 = vmatprep.subr.mxu0 0.0
    %118 = vmatpush1.msra.mxu0 %v73
    %119 = vmatprep.subr.mxu0 0.0
    %120 = vmatpush1.msra.mxu0 %v72
    %121 = vmatprep.subr.mxu0 0.0
    %122 = vmatpush1.msra.mxu0 %v71
    %123 = vmatprep.subr.mxu0 0.0
    %124 = vmatpush1.msra.mxu0 %v70
    %125 = vmatprep.subr.mxu0 0.0
    %126 = vmatpush2.msra.mxu0 0.0
    %127 = vmatprep.subr.mxu0 0.0
    %128 = vmatpush2.msra.mxu0 0.0
    %129 = vmatprep.subr.mxu0 0.0
    %130 = vmatpush2.msra.mxu0 0.0
    %131 = vmatprep.subr.mxu0 0.0
    %132 = vmatpush2.msra.mxu0 0.0
    %133 = vmatprep.subr.mxu0 0.0
    %134 = vmatpush2.msra.mxu0 0.0
    %135 = vmatprep.subr.mxu0 0.0
    %136 = vmatpush2.msra.mxu0 0.0
    %137 = vmatprep.subr.mxu0 0.0
    %138 = vmatpush2.msra.mxu0 0.0
    %139 = vmatprep.subr.mxu0 0.0
    %140 = vmatpush2.msra.mxu0 0.0
    %141 = vmatprep.subr.mxu0 0.0
    %142 = vmatpush2.msra.mxu0 0.0
    %143 = vmatprep.subr.mxu0 0.0
    %144 = vmatpush2.msra.mxu0 0.0
    %145 = vmatprep.subr.mxu0 0.0
    %146 = vmatpush2.msra.mxu0 0.0
    %147 = vmatprep.subr.mxu0 0.0
    %148 = vmatpush2.msra.mxu0 0.0
    %149 = vmatprep.subr.mxu0 0.0
    %150 = vmatpush2.msra.mxu0 0.0
    %151 = vmatprep.subr.mxu0 0.0
    %152 = vmatpush2.msra.mxu0 0.0
    %153 = vmatprep.subr.mxu0 0.0
    %154 = vmatpush2.msra.mxu0 0.0
    %155 = vmatprep.subr.mxu0 0.0
    %156 = vmatpush2.msra.mxu0 0.0
    %157 = vmatprep.mubr.f32.mxu0 0.0
    %158 = vmatmul.mubr.f32.gmra.mxu0 %v68
    %v159 = vpop.f32.mrf.mxu0
    %v160 = vadd.f32 %v91, %v159
    %v161 = vpop.f32.mrf.mxu0
    %162 = vmatprep.mubr.f32.mxu0 0.0
    %163 = vmatmul.mubr.f32.gmra.mxu0 %v69
    %v164 = vpop.f32.mrf.mxu0
    %v165 = vadd.f32 %v91, %v164
    %v166 = vpop.f32.mrf.mxu0
    %167 = vdwg.mxu0
    %v168 = vmul.f32 %v160, 0.5
    %v169 = vmul.f32 %v165, 0.5
    %v170 = vmul.f32 %v160, 0.70710677
    %v171 = vmul.f32 %v165, 0.70710677
    %v172 = verf.f32.pop %v170
    %v173 = verf.f32.pop %v171
    %v174 = vadd.f32 %v172, 1.0
    %v175 = vadd.f32 %v173, 1.0
    %v176 = vmul.f32 %v168, %v174
    %v177 = vmul.f32 %v169, %v175
    %v178 = vld [vmem:[#allocation8] sm:$0xff]
    %v179 = vld [vmem:[#allocation8 + $0x8] sm:$0xff]
    %v180 = vld [vmem:[#allocation8 + $0x10] sm:$0xff]
    %v181 = vld [vmem:[#allocation8 + $0x18] sm:$0xff]
    %v182 = vld [vmem:[#allocation8 + $0x20] sm:$0xff]
    %v183 = vld [vmem:[#allocation8 + $0x28] sm:$0xff]
    %v184 = vld [vmem:[#allocation8 + $0x30] sm:$0xff]
    %v185 = vld [vmem:[#allocation8 + $0x38] sm:$0xff]
    %v186 = vld [vmem:[#allocation8 + $0x40] sm:$0xff]
    %v187 = vld [vmem:[#allocation8 + $0x48] sm:$0xff]
    %v188 = vld [vmem:[#allocation8 + $0x50] sm:$0xff]
    %v189 = vld [vmem:[#allocation8 + $0x58] sm:$0xff]
    %v190 = vld [vmem:[#allocation8 + $0x60] sm:$0xff]
    %v191 = vld [vmem:[#allocation8 + $0x68] sm:$0xff]
    %v192 = vld [vmem:[#allocation8 + $0x70] sm:$0xff]
    %v193 = vld [vmem:[#allocation8 + $0x78] sm:$0xff]
    %v194 = vld [vmem:[%s5] sm:$0x1]
    %v196 = vlaneseq
    %v197 = vshrl.u32 %v196, 7
    %v198 = vsub.s32 0, %v197
    %v199 = vrot.slane %v194, %v198
    %201 = vmatprep.subr.mxu0 0.0
    %202 = vmatpush1.msra.mxu0 %v193
    %203 = vmatprep.subr.mxu0 0.0
    %204 = vmatpush1.msra.mxu0 %v192
    %205 = vmatprep.subr.mxu0 0.0
    %206 = vmatpush1.msra.mxu0 %v191
    %207 = vmatprep.subr.mxu0 0.0
    %208 = vmatpush1.msra.mxu0 %v190
    %209 = vmatprep.subr.mxu0 0.0
    %210 = vmatpush1.msra.mxu0 %v189
    %211 = vmatprep.subr.mxu0 0.0
    %212 = vmatpush1.msra.mxu0 %v188
    %213 = vmatprep.subr.mxu0 0.0
    %214 = vmatpush1.msra.mxu0 %v187
    %215 = vmatprep.subr.mxu0 0.0
    %216 = vmatpush1.msra.mxu0 %v186
    %217 = vmatprep.subr.mxu0 0.0
    %218 = vmatpush1.msra.mxu0 %v185
    %219 = vmatprep.subr.mxu0 0.0
    %220 = vmatpush1.msra.mxu0 %v184
    %221 = vmatprep.subr.mxu0 0.0
    %222 = vmatpush1.msra.mxu0 %v183
    %223 = vmatprep.subr.mxu0 0.0
    %224 = vmatpush1.msra.mxu0 %v182
    %225 = vmatprep.subr.mxu0 0.0
    %226 = vmatpush1.msra.mxu0 %v181
    %227 = vmatprep.subr.mxu0 0.0
    %228 = vmatpush1.msra.mxu0 %v180
    %229 = vmatprep.subr.mxu0 0.0
    %230 = vmatpush1.msra.mxu0 %v179
    %231 = vmatprep.subr.mxu0 0.0
    %232 = vmatpush1.msra.mxu0 %v178
    %233 = vmatprep.subr.mxu0 0.0
    %234 = vmatpush2.msra.mxu0 0.0
    %235 = vmatprep.subr.mxu0 0.0
    %236 = vmatpush2.msra.mxu0 0.0
    %237 = vmatprep.subr.mxu0 0.0
    %238 = vmatpush2.msra.mxu0 0.0
    %239 = vmatprep.subr.mxu0 0.0
    %240 = vmatpush2.msra.mxu0 0.0
    %241 = vmatprep.subr.mxu0 0.0
    %242 = vmatpush2.msra.mxu0 0.0
    %243 = vmatprep.subr.mxu0 0.0
    %244 = vmatpush2.msra.mxu0 0.0
    %245 = vmatprep.subr.mxu0 0.0
    %246 = vmatpush2.msra.mxu0 0.0
    %247 = vmatprep.subr.mxu0 0.0
    %248 = vmatpush2.msra.mxu0 0.0
    %249 = vmatprep.subr.mxu0 0.0
    %250 = vmatpush2.msra.mxu0 0.0
    %251 = vmatprep.subr.mxu0 0.0
    %252 = vmatpush2.msra.mxu0 0.0
    %253 = vmatprep.subr.mxu0 0.0
    %254 = vmatpush2.msra.mxu0 0.0
    %255 = vmatprep.subr.mxu0 0.0
    %256 = vmatpush2.msra.mxu0 0.0
    %257 = vmatprep.subr.mxu0 0.0
    %258 = vmatpush2.msra.mxu0 0.0
    %259 = vmatprep.subr.mxu0 0.0
    %260 = vmatpush2.msra.mxu0 0.0
    %261 = vmatprep.subr.mxu0 0.0
    %262 = vmatpush2.msra.mxu0 0.0
    %263 = vmatprep.subr.mxu0 0.0
    %264 = vmatpush2.msra.mxu0 0.0
    %265 = vmatprep.mubr.f32.mxu0 0.0
    %266 = vmatmul.mubr.f32.gmra.mxu0 %v176
    %v267 = vpop.f32.mrf.mxu0
    %v268 = vadd.f32 %v199, %v267
    %v269 = vpop.f32.mrf.mxu0
    %270 = vmatprep.mubr.f32.mxu0 0.0
    %271 = vmatmul.mubr.f32.gmra.mxu0 %v177
    %v272 = vpop.f32.mrf.mxu0
    %v273 = vadd.f32 %v199, %v272
    %v274 = vpop.f32.mrf.mxu0
    %275 = vdwg.mxu0
    %v276 = vstv %s66
    %v277 = vmul.f32 %v68, %v276
    %v278 = vmul.f32 %v69, %v276
    %v279 = vstv %s67
    %v280 = vmul.f32 %v268, %v279
    %v281 = vmul.f32 %v273, %v279
    %v282 = vadd.f32 %v277, %v280
    %v283 = vadd.f32 %v278, %v281
    %284 = vst [vmem:[#allocation9] sm:$0xff] %v282
    %285 = vst [vmem:[#allocation9 + $0x8] sm:$0xff] %v283
    // Predicated region
    $region38: #{tpu_custom_call.1} parent=1 // pred_check
      _
    $region39: #{tpu_custom_call.1} parent=1 // pred_check_branch
      %287 = sbr.rel (0) target = $region41
    $region40: #{tpu_custom_call.1} parent=1 // pred_region
      %s289 = ssub.s32 256, 256
      %290 = vsyncadd [#allocation5], %s289
      %s291 = sshll.u32 [#allocation9], 4
      %s292 = int_to_ptr.vmem [resolvable:$true] %s291
      %297 = dma.vmem_to_hbm [thread:$0]  %s292, 256, %s6, [#allocation5], 128, 128, 8
    $region41: #{tpu_custom_call.1} parent=1 // pred_fallthru
      _
    // Predicated region
    $region42: #{tpu_custom_call.1} parent=1 // pred_check
      _
    $region43: #{tpu_custom_call.1} parent=1 // pred_check_branch
      %299 = sbr.rel (0) target = $region45
    $region44: #{tpu_custom_call.1} parent=1 // pred_region
      %300 = dma.done [#allocation5], 256
    $region45: #{tpu_custom_call.1} parent=1 // pred_fallthru
      _
    %301 = vsyncpa [#allocation4], 1
    %302 = vsyncpa [#allocation7], 1
    %303 = vsyncpa [#allocation5], 1

</llo_original>
